<compile_context>
chip_gen: v7x
topology: tpu7x:2x2x1
jax: 0.10.0
libtpu: 0.0.40
codegen_flags: <defaults>
</compile_context>

<pallas_src>
from functools import partial

import jax
import jax.numpy as jnp
from jax.experimental import pallas as pl
from jax.experimental.pallas import tpu as pltpu


_LANES = 128
# 2048 rows x 128 lanes x 4 B = 1 MiB per block per slab.  Weight-decay variant
# touches 4 slabs x 2 pipeline buffers = 8 MiB of VMEM -> inside v5e's 16 MiB
# scoped-VMEM default; v6e/v7x have far more headroom.
_EMA_TILE_ROWS = 2048


def _cdiv(a, b):
    return -(-a // b)


def _round_up(a, b):
    return _cdiv(a, b) * b


# ----------------------------------------------------------------------------
# Pallas kernel 1: 1x1 conv in lane-dense (N*C, H*W) layout, VPU contraction.
# ----------------------------------------------------------------------------
def _conv1x1_kernel(x_ref, w_ref, b_ref, o_ref):
    # x_ref: (k*C_in, T)   w_ref: (C_out, C_in)   b_ref: (C_out, 1)
    # o_ref: (k*C_out, T)  where k = images per grid step (static).
    c_out, c_in = w_ref.shape
    k = x_ref.shape[0] // c_in
    x_all = x_ref[...].astype(jnp.float32)        # (k*C_in, T)
    w = w_ref[...].astype(jnp.float32)            # (C_out, C_in)
    b = b_ref[...].astype(jnp.float32)            # (C_out, 1)
    # K = C_in = 4 -> unrolled VPU broadcast-FMAs.  Deliberately NOT the MXU:
    # compute is pure filler under the HBM DMA for this memory-bound kernel.
    for bi in range(k):
        x = x_all[bi * c_in:(bi + 1) * c_in, :]   # (C_in, T)
        acc = w[:, 0:1] * x[0:1, :] + b
        for ci in range(1, c_in):
            acc = acc + w[:, ci:ci + 1] * x[ci:ci + 1, :]
        o_ref[bi * c_out:(bi + 1) * c_out, :] = acc.astype(o_ref.dtype)


def _conv_tiles(n, c_in, c_out, hw, max_tile_hw):
    # Images per grid step: pack the x block's sublane dim (k*C_in) to a
    # multiple of 8 so the input (8,128) tiles are fully used.
    k = n  # fallback: block == full batch dim (always layout-legal)
    for cand in (1, 2, 4, 8):
        if cand <= n and (cand * c_in) % 8 == 0 and (cand * c_out) % 8 == 0:
            k = cand
            break
    grid_b = _cdiv(n, k)
    if hw <= _LANES:
        tile = hw                                   # == full lane dim (legal)
    else:
        # Memory-bound: big lane tiles amortize the ~0.35 us per-step cost.
        tile = min(_round_up(max_tile_hw, _LANES), _round_up(hw, _LANES))
        if grid_b * _cdiv(hw, tile) < 2:
            # Keep >= 2 parallel blocks so both v7x TensorCores get work.
            tile = max(_LANES, _round_up(_cdiv(hw, 2), _LANES))
    return k, tile


@partial(jax.jit, static_argnames=("max_tile_hw",))
def conv1x1(x_nchw, weight, bias, *, max_tile_hw=16384):
    """weight: (C_out, C_in) = torch Conv2d(k=1).weight.squeeze(); bias: (C_out,)."""
    n, c_in, h, w = x_nchw.shape
    c_out = weight.shape[0]
    hw = h * w
    k, tile = _conv_tiles(n, c_in, c_out, hw, max_tile_hw)

    # Lane-dense 2-D layout: pixel axis is the lane dim, stores are full `vst`.
    # Both reshapes are free (contiguous NCHW); no host-side pad / slice passes.
    x2d = x_nchw.reshape(n * c_in, hw)
    b2d = bias.reshape(c_out, 1)
    grid = (_cdiv(n, k), _cdiv(hw, tile))           # ragged tails masked by Pallas

    out2d = pl.pallas_call(
        _conv1x1_kernel,
        out_shape=jax.ShapeDtypeStruct((n * c_out, hw), x_nchw.dtype),
        grid=grid,
        in_specs=[
            pl.BlockSpec((k * c_in, tile), lambda i, t: (i, t)),
            pl.BlockSpec((c_out, c_in), lambda i, t: (0, 0)),
            pl.BlockSpec((c_out, 1), lambda i, t: (0, 0)),
        ],
        out_specs=pl.BlockSpec((k * c_out, tile), lambda i, t: (i, t)),
        compiler_params=pltpu.CompilerParams(
            dimension_semantics=("parallel", "parallel")),
    )(x2d, weight, b2d)
    return out2d.reshape(n, c_out, h, w)


# ----------------------------------------------------------------------------
# Pallas kernel 2: EMA update over the packed (R, 128) parameter slab.
# Scalars come in via SMEM; slabs alias (and are donated) for in-place update.
# ----------------------------------------------------------------------------
def _ema_kernel(scal_ref, ema_ref, orig_ref, ema_out_ref):
    m = scal_ref[0]
    ema_out_ref[...] = ema_ref[...] * m + (1.0 - m) * orig_ref[...]


def _ema_wd_kernel(scal_ref, ema_ref, orig_ref, ema_out_ref, orig_out_ref):
    m = scal_ref[0]
    wd = scal_ref[1]
    # EMA uses the pre-decay originals (matches the PyTorch op order).
    ema_out_ref[...] = ema_ref[...] * m + (1.0 - m) * orig_ref[...]
    orig_out_ref[...] = orig_ref[...] * (1.0 - wd)


def _ema_tile_rows(r):
    if r <= 8:
        return r
    # >= 2 blocks (both v7x TensorCores), capped at 1 MiB-per-slab blocks.
    half = _round_up(_cdiv(r, 2), 8)
    return min(_EMA_TILE_ROWS, half)


def _ema_update_call(scalars, ema_slab, orig_slab, *, with_wd: bool):
    r, c = ema_slab.shape
    tile_r = _ema_tile_rows(r)
    spec = pl.BlockSpec((tile_r, c), lambda i: (i, 0))
    smem_spec = pl.BlockSpec(memory_space=pltpu.MemorySpace.SMEM)
    common = dict(
        grid=(_cdiv(r, tile_r),),                   # ragged last block is masked
        in_specs=[smem_spec, spec, spec],
        compiler_params=pltpu.CompilerParams(dimension_semantics=("parallel",)),
    )
    if with_wd:
        return pl.pallas_call(
            _ema_wd_kernel,
            out_shape=(jax.ShapeDtypeStruct((r, c), jnp.float32),
                       jax.ShapeDtypeStruct((r, c), jnp.float32)),
            out_specs=(spec, spec),
            input_output_aliases={1: 0, 2: 1},      # ema->out0, orig->out1 (in place)
            **common,
        )(scalars, ema_slab, orig_slab)
    # No weight decay: single output, no wasted HBM write of the orig slab.
    return pl.pallas_call(
        _ema_kernel,
        out_shape=jax.ShapeDtypeStruct((r, c), jnp.float32),
        out_specs=spec,
        input_output_aliases={1: 0},                # ema -> out (in place)
        **common,
    )(scalars, ema_slab, orig_slab)


# Standalone EMA-update dispatches (used by EMANet._update).  Slabs are DONATED
# so the declared aliases are realized in HBM (no defensive copy at the jit
# boundary).
_ema_update_no_wd = jax.jit(partial(_ema_update_call, with_wd=False),
                            donate_argnums=(1,))
_ema_update_wd = jax.jit(partial(_ema_update_call, with_wd=True),
                         donate_argnums=(1, 2))


# ----------------------------------------------------------------------------
# Parameter slab packing (done once at construction).
# ----------------------------------------------------------------------------
def _pack_params(params):
    flats = [jnp.asarray(p).reshape(-1).astype(jnp.float32) for p in params]
    total = sum(int(f.size) for f in flats)
    rows = _round_up(max(_cdiv(total, _LANES), 1), 8)      # (8, 128) alignment only
    slab = jnp.concatenate(flats)
    slab = jnp.pad(slab, (0, rows * _LANES - total))
    return slab.reshape(rows, _LANES)


def _unpack_params(slab, sizes, shapes, dtypes):
    flat = slab.reshape(-1)
    out, off = [], 0
    for sz, shp, dt in zip(sizes, shapes, dtypes):
        out.append(flat[off:off + sz].reshape(shp).astype(dt))
        off += sz
    return out


# ----------------------------------------------------------------------------
# EMANet wrapper (mirrors the PyTorch module semantics).
# ----------------------------------------------------------------------------
class EMANet:
    def __init__(self, params, momentum, wrap_model=False, weight_decay=None):
        if momentum < 0 or 1 < momentum:
            raise RuntimeError(f"`momentum` is expected to be in [0, 1], but got {momentum}.")
        self.momentum = momentum
        self.wrap_model = wrap_model
        self.weight_decay = weight_decay
        self.training = True

        templates = [jnp.asarray(p) for p in params]
        self._sizes = [int(p.size) for p in templates]
        self._shapes = [p.shape for p in templates]
        self._dtypes = [p.dtype for p in templates]

        # Pack once; the (R, 128) slabs are the source of truth for the params.
        self.orig_slab = _pack_params(templates)                 # original_model
        self.ema_slab = jnp.array(self.orig_slab, copy=True)     # deepcopy(model)
        self._orig_cache = list(templates)
        self._ema_cache = list(templates)

        # Device-resident scalars built once (no per-step host->device xfer).
        self._scalars = jnp.array(
            [momentum, 0.0 if weight_decay is None else weight_decay],
            dtype=jnp.float32)

        # One fused, donated dispatch per training step: unpack -> conv -> EMA.
        self._train_step = self._build_train_step()
        # TODO(synk): the wrapped 1x1-conv model has no buffers, so the
        # buffer-copy branch of _update has nothing to copy.

    def _build_train_step(self):
        wrap_model = self.wrap_model
        has_wd = self.weight_decay is not None
        sizes, shapes, dtypes = self._sizes, self._shapes, self._dtypes

        def step(x, scalars, ema_slab, orig_slab):
            src = orig_slab if wrap_model else ema_slab
            weight, bias = _unpack_params(src, sizes, shapes, dtypes)
            out = conv1x1(x, weight, bias)
            if has_wd:
                new_ema, new_orig = _ema_update_call(
                    scalars, ema_slab, orig_slab, with_wd=True)
                return out, new_ema, new_orig
            new_ema = _ema_update_call(scalars, ema_slab, orig_slab, with_wd=False)
            return out, new_ema

        donate = (2, 3) if has_wd else (2,)
        return jax.jit(step, donate_argnums=donate)

    # lazily unpacked views of the slabs -------------------------------------
    @property
    def original_params(self):
        if self._orig_cache is None:
            self._orig_cache = _unpack_params(
                self.orig_slab, self._sizes, self._shapes, self._dtypes)
        return self._orig_cache

    @property
    def ema_params(self):
        if self._ema_cache is None:
            self._ema_cache = _unpack_params(
                self.ema_slab, self._sizes, self._shapes, self._dtypes)
        return self._ema_cache

    def train(self):
        self.training = True
        return self

    def eval(self):
        self.training = False
        return self

    def _apply_model(self, params, x):
        weight, bias = params
        return conv1x1(x, weight, bias)

    def _update(self, update_buffers: bool):
        # Non-fused fallback (the fused training step in __call__ is preferred).
        if self.weight_decay is None:
            self.ema_slab = _ema_update_no_wd(self._scalars, self.ema_slab, self.orig_slab)
            self._ema_cache = None
        else:
            self.ema_slab, self.orig_slab = _ema_update_wd(
                self._scalars, self.ema_slab, self.orig_slab)
            self._ema_cache = None
            self._orig_cache = None
        # update_buffers: no buffers in this model (see TODO in __init__).

    def __call__(self, x, update_buffers: bool = True):
        if self.training:
            if self.weight_decay is None:
                outputs, self.ema_slab = self._train_step(
                    x, self._scalars, self.ema_slab, self.orig_slab)
                self._ema_cache = None
            else:
                outputs, self.ema_slab, self.orig_slab = self._train_step(
                    x, self._scalars, self.ema_slab, self.orig_slab)
                self._ema_cache = None
                self._orig_cache = None
            # update_buffers: nothing to copy (no buffers in this model).
            return outputs
        return self._apply_model(self.ema_params, x)


# ----------------------------------------------------------------------------
# main
# ----------------------------------------------------------------------------
if __name__ == "__main__":
    key = jax.random.PRNGKey(0)
    kx, kw, kb = jax.random.split(key, 3)

    N, C_IN, H, W = 2, 4, 16, 16
    C_OUT = 8

    x = jax.random.normal(kx, (N, C_IN, H, W), dtype=jnp.float32)
    weight = 0.1 * jax.random.normal(kw, (C_OUT, C_IN), dtype=jnp.float32)  # Conv2d 1x1 weight (squeezed)
    bias = 0.01 * jax.random.normal(kb, (C_OUT,), dtype=jnp.float32)

    momentum = 0.9
    net = EMANet([weight, bias], momentum=momentum, wrap_model=False, weight_decay=None).train()

    # Keep a pristine copy for reference checking (EMA of identical params is identical).
    ema_w_before = jnp.array(net.ema_params[0], copy=True)

    out = net(x)                       # training forward: model output + EMA update (fused)
    out = jax.block_until_ready(out)
    ema_w_after = jax.block_until_ready(net.ema_params[0])

    # Reference checks in plain JAX.
    x2d = jnp.transpose(x, (0, 2, 3, 1)).reshape(-1, C_IN)
    ref2d = x2d @ weight.T + bias
    ref = jnp.transpose(ref2d.reshape(N, H, W, C_OUT), (0, 3, 1, 2))
    assert out.shape == (N, C_OUT, H, W)
    assert jnp.allclose(out, ref, atol=1e-5, rtol=1e-5)

    ref_ema_w = ema_w_before * momentum + (1.0 - momentum) * weight
    assert jnp.allclose(ema_w_after, ref_ema_w, atol=1e-6, rtol=1e-6)

    # Weight-decay branch (two-output aliased EMA kernel, both slabs donated).
    wd = 1e-2
    net_wd = EMANet([weight, bias], momentum=momentum, wrap_model=True, weight_decay=wd).train()
    out_wd = jax.block_until_ready(net_wd(x))
    assert jnp.allclose(out_wd, ref, atol=1e-5, rtol=1e-5)
    assert jnp.allclose(net_wd.original_params[0], weight * (1.0 - wd), atol=1e-6, rtol=1e-6)
    assert jnp.allclose(net_wd.ema_params[0], ref_ema_w, atol=1e-6, rtol=1e-6)

    # eval path uses the EMA model.
    out_eval = jax.block_until_ready(net.eval()(x))
    assert out_eval.shape == (N, C_OUT, H, W)
    assert jnp.allclose(out_eval, ref, atol=1e-5, rtol=1e-5)

    print("KERNEL_OK")
</pallas_src>

<mosaic_0001>
module attributes {stable_mosaic.version = 11 : i64} {
  func.func @_conv1x1_kernel(%arg0: i32, %arg1: i32, %arg2: memref<8x128xf32, #tpu.memory_space<vmem>>, %arg3: memref<8x4xf32, #tpu.memory_space<vmem>>, %arg4: memref<8x1xf32, #tpu.memory_space<vmem>>, %arg5: memref<16x128xf32, #tpu.memory_space<vmem>>) attributes {dimension_semantics = [#tpu.dimension_semantics<parallel>, #tpu.dimension_semantics<parallel>], iteration_bounds = array<i64: 1, 2>, scalar_prefetch = 0 : i64, scratch_operands = 0 : i64, tpu.core_type = #tpu.core_type<tc>, window_params = [{transform_indices = @transform_0, window_bounds = array<i64: 8, 128>}, {pipeline_mode = #tpu.pipeline_mode<synchronous>, transform_indices = @transform_1, window_bounds = array<i64: 8, 4>}, {pipeline_mode = #tpu.pipeline_mode<synchronous>, transform_indices = @transform_2, window_bounds = array<i64: 8, 1>}, {transform_indices = @transform_3, window_bounds = array<i64: 16, 128>}]} {
    %c0 = arith.constant 0 : index
    %c0_0 = arith.constant 0 : index
    %0 = vector.load %arg2[%c0, %c0_0] : memref<8x128xf32, #tpu.memory_space<vmem>>, vector<8x128xf32>
    %c0_1 = arith.constant 0 : index
    %c0_2 = arith.constant 0 : index
    %1 = vector.load %arg3[%c0_1, %c0_2] : memref<8x4xf32, #tpu.memory_space<vmem>>, vector<8x4xf32>
    %c0_3 = arith.constant 0 : index
    %c0_4 = arith.constant 0 : index
    %2 = vector.load %arg4[%c0_3, %c0_4] : memref<8x1xf32, #tpu.memory_space<vmem>>, vector<8x1xf32>
    %3 = vector.extract_strided_slice %0 {offsets = [0, 0], sizes = [4, 128], strides = [1, 1]} : vector<8x128xf32> to vector<4x128xf32>
    %4 = vector.extract_strided_slice %1 {offsets = [0, 0], sizes = [8, 1], strides = [1, 1]} : vector<8x4xf32> to vector<8x1xf32>
    %5 = vector.extract_strided_slice %3 {offsets = [0, 0], sizes = [1, 128], strides = [1, 1]} : vector<4x128xf32> to vector<1x128xf32>
    %6 = vector.broadcast %4 : vector<8x1xf32> to vector<8x128xf32>
    %7 = vector.broadcast %5 : vector<1x128xf32> to vector<8x128xf32>
    %8 = arith.mulf %6, %7 : vector<8x128xf32>
    %9 = vector.broadcast %2 : vector<8x1xf32> to vector<8x128xf32>
    %10 = arith.addf %8, %9 : vector<8x128xf32>
    %11 = vector.extract_strided_slice %1 {offsets = [0, 1], sizes = [8, 1], strides = [1, 1]} : vector<8x4xf32> to vector<8x1xf32>
    %12 = vector.extract_strided_slice %3 {offsets = [1, 0], sizes = [1, 128], strides = [1, 1]} : vector<4x128xf32> to vector<1x128xf32>
    %13 = vector.broadcast %11 : vector<8x1xf32> to vector<8x128xf32>
    %14 = vector.broadcast %12 : vector<1x128xf32> to vector<8x128xf32>
    %15 = arith.mulf %13, %14 : vector<8x128xf32>
    %16 = arith.addf %10, %15 : vector<8x128xf32>
    %17 = vector.extract_strided_slice %1 {offsets = [0, 2], sizes = [8, 1], strides = [1, 1]} : vector<8x4xf32> to vector<8x1xf32>
    %18 = vector.extract_strided_slice %3 {offsets = [2, 0], sizes = [1, 128], strides = [1, 1]} : vector<4x128xf32> to vector<1x128xf32>
    %19 = vector.broadcast %17 : vector<8x1xf32> to vector<8x128xf32>
    %20 = vector.broadcast %18 : vector<1x128xf32> to vector<8x128xf32>
    %21 = arith.mulf %19, %20 : vector<8x128xf32>
    %22 = arith.addf %16, %21 : vector<8x128xf32>
    %23 = vector.extract_strided_slice %1 {offsets = [0, 3], sizes = [8, 1], strides = [1, 1]} : vector<8x4xf32> to vector<8x1xf32>
    %24 = vector.extract_strided_slice %3 {offsets = [3, 0], sizes = [1, 128], strides = [1, 1]} : vector<4x128xf32> to vector<1x128xf32>
    %25 = vector.broadcast %23 : vector<8x1xf32> to vector<8x128xf32>
    %26 = vector.broadcast %24 : vector<1x128xf32> to vector<8x128xf32>
    %27 = arith.mulf %25, %26 : vector<8x128xf32>
    %28 = arith.addf %22, %27 : vector<8x128xf32>
    %c0_5 = arith.constant 0 : index
    %c0_6 = arith.constant 0 : index
    %29 = vector.load %arg5[%c0_5, %c0_6] : memref<16x128xf32, #tpu.memory_space<vmem>>, vector<8x128xf32>
    tpu.vector_store %arg5[%c0_5, %c0_6], %28 {strides = array<i32>} : memref<16x128xf32, #tpu.memory_space<vmem>>, vector<8x128xf32>,
    %30 = vector.extract_strided_slice %0 {offsets = [4, 0], sizes = [4, 128], strides = [1, 1]} : vector<8x128xf32> to vector<4x128xf32>
    %31 = vector.extract_strided_slice %1 {offsets = [0, 0], sizes = [8, 1], strides = [1, 1]} : vector<8x4xf32> to vector<8x1xf32>
    %32 = vector.extract_strided_slice %30 {offsets = [0, 0], sizes = [1, 128], strides = [1, 1]} : vector<4x128xf32> to vector<1x128xf32>
    %33 = vector.broadcast %31 : vector<8x1xf32> to vector<8x128xf32>
    %34 = vector.broadcast %32 : vector<1x128xf32> to vector<8x128xf32>
    %35 = arith.mulf %33, %34 : vector<8x128xf32>
    %36 = vector.broadcast %2 : vector<8x1xf32> to vector<8x128xf32>
    %37 = arith.addf %35, %36 : vector<8x128xf32>
    %38 = vector.extract_strided_slice %1 {offsets = [0, 1], sizes = [8, 1], strides = [1, 1]} : vector<8x4xf32> to vector<8x1xf32>
    %39 = vector.extract_strided_slice %30 {offsets = [1, 0], sizes = [1, 128], strides = [1, 1]} : vector<4x128xf32> to vector<1x128xf32>
    %40 = vector.broadcast %38 : vector<8x1xf32> to vector<8x128xf32>
    %41 = vector.broadcast %39 : vector<1x128xf32> to vector<8x128xf32>
    %42 = arith.mulf %40, %41 : vector<8x128xf32>
    %43 = arith.addf %37, %42 : vector<8x128xf32>
    %44 = vector.extract_strided_slice %1 {offsets = [0, 2], sizes = [8, 1], strides = [1, 1]} : vector<8x4xf32> to vector<8x1xf32>
    %45 = vector.extract_strided_slice %30 {offsets = [2, 0], sizes = [1, 128], strides = [1, 1]} : vector<4x128xf32> to vector<1x128xf32>
    %46 = vector.broadcast %44 : vector<8x1xf32> to vector<8x128xf32>
    %47 = vector.broadcast %45 : vector<1x128xf32> to vector<8x128xf32>
    %48 = arith.mulf %46, %47 : vector<8x128xf32>
    %49 = arith.addf %43, %48 : vector<8x128xf32>
    %50 = vector.extract_strided_slice %1 {offsets = [0, 3], sizes = [8, 1], strides = [1, 1]} : vector<8x4xf32> to vector<8x1xf32>
    %51 = vector.extract_strided_slice %30 {offsets = [3, 0], sizes = [1, 128], strides = [1, 1]} : vector<4x128xf32> to vector<1x128xf32>
    %52 = vector.broadcast %50 : vector<8x1xf32> to vector<8x128xf32>
    %53 = vector.broadcast %51 : vector<1x128xf32> to vector<8x128xf32>
    %54 = arith.mulf %52, %53 : vector<8x128xf32>
    %55 = arith.addf %49, %54 : vector<8x128xf32>
    %c8 = arith.constant 8 : index
    %c0_7 = arith.constant 0 : index
    %56 = vector.load %arg5[%c8, %c0_7] : memref<16x128xf32, #tpu.memory_space<vmem>>, vector<8x128xf32>
    tpu.vector_store %arg5[%c8, %c0_7], %55 {strides = array<i32>} : memref<16x128xf32, #tpu.memory_space<vmem>>, vector<8x128xf32>,
    return
  }
  func.func @transform_0(%arg0: i32, %arg1: i32) -> (i32, i32) {
    %c0_i32 = arith.constant 0 : i32
    return %arg0, %arg1 : i32, i32
  }
  func.func @transform_1(%arg0: i32, %arg1: i32) -> (i32, i32) {
    %c0_i32 = arith.constant 0 : i32
    %c0_i32_0 = arith.constant 0 : i32
    %c0_i32_1 = arith.constant 0 : i32
    return %c0_i32, %c0_i32_0 : i32, i32
  }
  func.func @transform_2(%arg0: i32, %arg1: i32) -> (i32, i32) {
    %c0_i32 = arith.constant 0 : i32
    %c0_i32_0 = arith.constant 0 : i32
    %c0_i32_1 = arith.constant 0 : i32
    return %c0_i32, %c0_i32_0 : i32, i32
  }
  func.func @transform_3(%arg0: i32, %arg1: i32) -> (i32, i32) {
    %c0_i32 = arith.constant 0 : i32
    return %arg0, %arg1 : i32, i32
  }
}

</mosaic_0001>

<llo_original>
// kernel: conv1x1.1
$region0: #{conv1x1.1}
  #allocation0 [shape = 'u32[]', space=smem, size = 0x4, offset = 0x4, fixed_abs, tag = 'smem constant byte address 0x4 - core index']
  #allocation1 [shape = 'u32[144,128]{1,0:T(1,128)}', space=vmem, size = 0x12000, scoped, tag = 'internal scratch']
  %s0 = inlined_call_operand.vmem [shape: f32[8,256], index: 0, kind: input, shape index: {}]
  %s1 = inlined_call_operand.vmem [shape: f32[8,4], index: 1, kind: input, shape index: {}]
  %s2 = inlined_call_operand.vmem [shape: f32[8,1], index: 2, kind: input, shape index: {}]
  %s3 = inlined_call_operand.vmem [shape: f32[16,256], index: 3, kind: output, shape index: {}]
  %s4 = sld [smem:[#allocation0]]
  $region79: #{conv1x1.1} parent=0
    _
  %s6 = ssub.s32 1, %s4
  %s7 = scalar_select 0, %s6, %s4
  $region1: #{conv1x1.1} parent=0
    #allocation2 [shape = 'u8[16384]{0}', space=vmem, size = 0x4000, scoped, tag = 'output window, operand 0']
    loop: start=0, step=1, limit=4
    $region2: #{conv1x1.1} parent=1 // loop_pre_header
      _
    $region3: #{conv1x1.1} parent=1 // loop_header
      %s9 = sphi 0, %s13
      %p10 = scmp.ge.s32.totalorder %s9, 4
      %s16 = sphi 0, %s28
      %s17 = sphi 0, %s24
      %s18 = sphi 0, %s16
      %s19 = sphi 0, %s17
      %s20 = sphi 0, %s18
      %s21 = sphi 0, %s19
      %s33 = sphi 0, %s35
      %s36 = sphi 0, %s33
      %s37 = sphi 0, %s36
      %s53 = sphi 0, %s37
      %s57 = sphi 0, %s57
      %s59 = sphi 0, %s57
      %s60 = sphi 0, %s59
      %s74 = sphi 0, %s60
      %s78 = sphi 0, %s78
      %s80 = sphi 0, %s78
      %s81 = sphi 0, %s80
      %s95 = sphi 0, %s81
      %s103 = sphi 0, %s105
      %s106 = sphi 0, %s103
      %s107 = sphi 0, %s106
      %s123 = sphi 0, %s107
    $region4: #{conv1x1.1} parent=1 // loop_header_branch
      %12 = sbr.rel (%p10) target = $region8
    $region5: #{conv1x1.1} parent=1 // loop_body
      %s14 = ssub.s32 %s9, 1
      %s15 = ssub.s32 %s9, 2
      %s22 = sadd.s32 1, %s17
      %p23 = scmp.ge.s32.totalorder %s22, 2
      %s24 = scalar_select %p23, 0, %s22
      %s25 = sadd.s32 1, %s16
      %s26 = scalar_select %p23, %s25, %s16
      %p27 = scmp.ge.s32.totalorder %s26, 1
      %s28 = scalar_select %p27, 0, %s26
      %s29 = ssub.s32 %s16, %s28
      %s30 = ssub.s32 %s17, %s24
      %s31 = sor.u32 %s29, %s30
      %p32 = scmp.eq.s32.totalorder %s31, 0
      %s34 = sadd.s32 %s33, 1
      %s35 = scalar_select %p32, %s33, %s34
      %p38 = pneg %p32
      %p39 = scmp.eq.s32.totalorder %s9, 1
      %p40 = por %p38, %p39
      %p41 = scmp.ne.s32.totalorder %s33, %s36
      %p42 = scmp.eq.s32.totalorder %s9, 0
      %p43 = por %p41, %p42
      %p44 = scmp.ne.s32.totalorder %s33, %s36
      %p45 = scmp.eq.s32.totalorder %s14, 1
      %p46 = por %p44, %p45
      %p47 = scmp.ne.s32.totalorder %s36, %s37
      %p48 = scmp.eq.s32.totalorder %s14, 0
      %p49 = por %p47, %p48
      %p50 = scmp.ne.s32.totalorder %s36, %s37
      %p51 = scmp.eq.s32.totalorder %s15, 1
      %p52 = por %p50, %p51
      %p54 = scmp.ne.s32.totalorder %s37, %s53
      %p55 = scmp.eq.s32.totalorder %s15, 0
      %p56 = por %p54, %p55
      %s58 = sadd.s32 %s57, 1
      %p61 = scmp.eq.s32.totalorder %s9, 1
      %p62 = scmp.ne.s32.totalorder %s57, %s59
      %p63 = scmp.eq.s32.totalorder %s9, 0
      %p64 = por %p62, %p63
      %p65 = scmp.ne.s32.totalorder %s57, %s59
      %p66 = scmp.eq.s32.totalorder %s14, 1
      %p67 = por %p65, %p66
      %p68 = scmp.ne.s32.totalorder %s59, %s60
      %p69 = scmp.eq.s32.totalorder %s14, 0
      %p70 = por %p68, %p69
      %p71 = scmp.ne.s32.totalorder %s59, %s60
      %p72 = scmp.eq.s32.totalorder %s15, 1
      %p73 = por %p71, %p72
      %p75 = scmp.ne.s32.totalorder %s60, %s74
      %p76 = scmp.eq.s32.totalorder %s15, 0
      %p77 = por %p75, %p76
      %s79 = sadd.s32 %s78, 1
      %p82 = scmp.eq.s32.totalorder %s9, 1
      %p83 = scmp.ne.s32.totalorder %s78, %s80
      %p84 = scmp.eq.s32.totalorder %s9, 0
      %p85 = por %p83, %p84
      %p86 = scmp.ne.s32.totalorder %s78, %s80
      %p87 = scmp.eq.s32.totalorder %s14, 1
      %p88 = por %p86, %p87
      %p89 = scmp.ne.s32.totalorder %s80, %s81
      %p90 = scmp.eq.s32.totalorder %s14, 0
      %p91 = por %p89, %p90
      %p92 = scmp.ne.s32.totalorder %s80, %s81
      %p93 = scmp.eq.s32.totalorder %s15, 1
      %p94 = por %p92, %p93
      %p96 = scmp.ne.s32.totalorder %s81, %s95
      %p97 = scmp.eq.s32.totalorder %s15, 0
      %p98 = por %p96, %p97
      %s99 = ssub.s32 %s16, %s28
      %s100 = ssub.s32 %s17, %s24
      %s101 = sor.u32 %s99, %s100
      %p102 = scmp.eq.s32.totalorder %s101, 0
      %s104 = sadd.s32 %s103, 1
      %s105 = scalar_select %p102, %s103, %s104
      %p108 = pneg %p102
      %p109 = scmp.eq.s32.totalorder %s9, 1
      %p110 = por %p108, %p109
      %p111 = scmp.ne.s32.totalorder %s103, %s106
      %p112 = scmp.eq.s32.totalorder %s9, 0
      %p113 = por %p111, %p112
      %p114 = scmp.ne.s32.totalorder %s103, %s106
      %p115 = scmp.eq.s32.totalorder %s14, 1
      %p116 = por %p114, %p115
      %p117 = scmp.ne.s32.totalorder %s106, %s107
      %p118 = scmp.eq.s32.totalorder %s14, 0
      %p119 = por %p117, %p118
      %p120 = scmp.ne.s32.totalorder %s106, %s107
      %p121 = scmp.eq.s32.totalorder %s15, 1
      %p122 = por %p120, %p121
      %p124 = scmp.ne.s32.totalorder %s107, %s123
      %p125 = scmp.eq.s32.totalorder %s15, 0
      %p126 = por %p124, %p125
      %p127 = scmp.le.s32.totalorder 1, %s9
      %p128 = scmp.lt.s32.totalorder %s9, 3
      %p129 = pnand %p127, %p128
      %p130 = pneg %p129
      // Predicated region
      $region9: #{conv1x1.1} parent=5 // pred_check
        _
      $region10: #{conv1x1.1} parent=5 // pred_check_branch
        %132 = sbr.rel (%p129) target = $region12
      $region11: #{conv1x1.1} parent=5 // pred_region
        %s133 = ssub.s32 %s9, 1
        // Predicated region
        $region13: #{conv1x1.1} parent=11 // pred_check
          %p134 = pneg %p70
        $region14: #{conv1x1.1} parent=11 // pred_check_branch
          %136 = sbr.rel (%p134) target = $region16
        $region15: #{conv1x1.1} parent=11 // pred_region
          _
        $region16: #{conv1x1.1} parent=11 // pred_fallthru
          _
        // Predicated region
        $region17: #{conv1x1.1} parent=11 // pred_check
          %p137 = pneg %p91
        $region18: #{conv1x1.1} parent=11 // pred_check_branch
          %139 = sbr.rel (%p137) target = $region20
        $region19: #{conv1x1.1} parent=11 // pred_region
          _
        $region20: #{conv1x1.1} parent=11 // pred_fallthru
          _
      $region12: #{conv1x1.1} parent=5 // pred_fallthru
        _
      %p140 = scmp.lt.s32.totalorder %s9, 2
      // Predicated region
      $region21: #{conv1x1.1} parent=5 // pred_check
        %p141 = pneg %p140
      $region22: #{conv1x1.1} parent=5 // pred_check_branch
        %143 = sbr.rel (%p141) target = $region24
      $region23: #{conv1x1.1} parent=5 // pred_region
        // Predicated region
        $region25: #{conv1x1.1} parent=23 // pred_check
          %p144 = pneg %p43
        $region26: #{conv1x1.1} parent=23 // pred_check_branch
          %146 = sbr.rel (%p144) target = $region28
        $region27: #{conv1x1.1} parent=23 // pred_region
          %p147 = scmp.lt.s32.totalorder %s16, 0
          %s148 = scalar_select %p147, %s16, 0
          %p149 = scmp.lt.s32.totalorder %s17, 1
          %s150 = scalar_select %p149, %s17, 1
          %s151 = smul.addr %s148, 2
          %s152 = sadd.s32 %s150, %s151
          %s153 = smul.addr %s152, 8
          %s154 = scalar_lea.vmem %s0, %s153
        $region28: #{conv1x1.1} parent=23 // pred_fallthru
          _
      $region24: #{conv1x1.1} parent=5 // pred_fallthru
        _
      %p155 = scmp.le.s32.totalorder 1, %s9
      %p156 = scmp.lt.s32.totalorder %s9, 3
      %p157 = pnand %p155, %p156
      %p158 = pneg %p157
      // Predicated region
      $region29: #{conv1x1.1} parent=5 // pred_check
        _
      $region30: #{conv1x1.1} parent=5 // pred_check_branch
        %160 = sbr.rel (%p157) target = $region32
      $region31: #{conv1x1.1} parent=5 // pred_region
        %s161 = ssub.s32 %s9, 1
        %p162 = scmp.lt.s32.totalorder %s18, 0
        %s163 = scalar_select %p162, %s18, 0
        %p164 = scmp.lt.s32.totalorder %s19, 1
        %s165 = scalar_select %p164, %s19, 1
        %s166 = smul.addr %s163, 2
        %s167 = sadd.s32 %s165, %s166
        %s168 = smul.addr %s167, 8
        %s169 = scalar_lea.vmem %s0, %s168
        %p170 = pneg %p49
        %p171 = pneg %p46
        %p172 = pneg %p70
        %p173 = pneg %p67
        %p174 = pneg %p91
        %p175 = pneg %p88
        %p176 = pneg %p119
        %p177 = pneg %p116
        %s178 = sand.u32 %s106, 1
        %s179 = sand.u32 %s106, 1
        %s180 = smul.addr %s179, 16
        %s181 = scalar_lea.vmem [#allocation2], %s180
        %p182 = scmp.lt.s32.totalorder %s18, 0
        %s183 = scalar_select %p182, %s18, 0
        %p184 = scmp.lt.s32.totalorder %s19, 1
        %s185 = scalar_select %p184, %s19, 1
        %s186 = smul.addr %s183, 2
        %s187 = sadd.s32 %s185, %s186
        %s188 = smul.addr %s187, 8
        %s189 = scalar_lea.vmem %s0, %s188
        %s190 = smul.u32 2, %s18
        %v191 = vld [vmem:[%s189] sm:$0xff]
        %v192 = vld [vmem:[%s1] sm:$0xff]
        %v193 = vld [vmem:[%s2] sm:$0xff]
        %195 = vset.pattern.permute.xlu0 0
        %196 = vperm.xlu0 %195, %v192
        %v197 = vpop.permute.xlu0 %196
        %v199 = vlaneseq
        %v200 = vshrl.u32 %v199, 7
        %v201 = vsub.s32 0, %v200
        %v202 = vrot.slane %v191, %v201
        %v203 = vmul.f32 %v197, %v202
        %205 = vset.pattern.permute.xlu0 0
        %206 = vperm.xlu0 %205, %v193
        %v207 = vpop.permute.xlu0 %206
        %v209 = vadd.f32 %v203, %v207
        %210 = vset.pattern.permute.xlu0 1
        %211 = vperm.xlu0 %210, %v192
        %v212 = vpop.permute.xlu0 %211
        %v214 = vlaneseq
        %v215 = vshrl.u32 %v214, 7
        %v216 = vsub.s32 1, %v215
        %v217 = vrot.slane %v191, %v216
        %v218 = vmul.f32 %v212, %v217
        %v219 = vadd.f32 %v209, %v218
        %220 = vset.pattern.permute.xlu0 2
        %221 = vperm.xlu0 %220, %v192
        %v222 = vpop.permute.xlu0 %221
        %v224 = vlaneseq
        %v225 = vshrl.u32 %v224, 7
        %v226 = vsub.s32 2, %v225
        %v227 = vrot.slane %v191, %v226
        %v228 = vmul.f32 %v222, %v227
        %v229 = vadd.f32 %v219, %v228
        %230 = vset.pattern.permute.xlu0 3
        %231 = vperm.xlu0 %230, %v192
        %v232 = vpop.permute.xlu0 %231
        %v234 = vlaneseq
        %v235 = vshrl.u32 %v234, 7
        %v236 = vsub.s32 3, %v235
        %v237 = vrot.slane %v191, %v236
        %v238 = vmul.f32 %v232, %v237
        %v239 = vadd.f32 %v229, %v238
        %240 = vst [vmem:[%s181] sm:$0xff] %v239
        %v241 = vlaneseq
        %v242 = vshrl.u32 %v241, 7
        %v243 = vsub.s32 4, %v242
        %v244 = vrot.slane %v191, %v243
        %v245 = vmul.f32 %v197, %v244
        %v246 = vadd.f32 %v245, %v207
        %v247 = vlaneseq
        %v248 = vshrl.u32 %v247, 7
        %v249 = vsub.s32 5, %v248
        %v250 = vrot.slane %v191, %v249
        %v251 = vmul.f32 %v212, %v250
        %v252 = vadd.f32 %v246, %v251
        %v253 = vlaneseq
        %v254 = vshrl.u32 %v253, 7
        %v255 = vsub.s32 6, %v254
        %v256 = vrot.slane %v191, %v255
        %v257 = vmul.f32 %v222, %v256
        %v258 = vadd.f32 %v252, %v257
        %v259 = vlaneseq
        %v260 = vshrl.u32 %v259, 7
        %v261 = vsub.s32 7, %v260
        %v262 = vrot.slane %v191, %v261
        %v263 = vmul.f32 %v232, %v262
        %v264 = vadd.f32 %v258, %v263
        %265 = vst [vmem:[%s181 + $0x8] sm:$0xff] %v264
        %s266 = sand.u32 %s106, 1
        %s267 = sand.u32 %s106, 1
        %s268 = smul.addr %s267, 16
        %s269 = scalar_lea.vmem [#allocation2], %s268
        // Predicated region
        $region33: #{conv1x1.1} parent=31 // pred_check
          %p270 = pneg %p116
        $region34: #{conv1x1.1} parent=31 // pred_check_branch
          %272 = sbr.rel (%p270) target = $region36
        $region35: #{conv1x1.1} parent=31 // pred_region
          %s273 = smul.u32 2, %s18
          %s274 = smul.addr %s273, 2
          %s275 = sadd.s32 %s19, %s274
          %s276 = smul.addr %s275, 8
          %s277 = scalar_lea.vmem %s3, %s276
          // Predicated region
          $region37: #{conv1x1.1} parent=35 // pred_check
            _
          $region38: #{conv1x1.1} parent=35 // pred_check_branch
            %279 = sbr.rel (0) target = $region40
          $region39: #{conv1x1.1} parent=35 // pred_region
            // Predicated region
            $region41: #{conv1x1.1} parent=39 // pred_check
              _
            $region42: #{conv1x1.1} parent=39 // pred_check_branch
              %281 = sbr.rel (0) target = $region44
            $region43: #{conv1x1.1} parent=39 // pred_region
              // Predicated region
              $region56: #{conv1x1.1} parent=43 // pred_check
                _
              $region57: #{conv1x1.1} parent=43 // pred_check_branch
                %298 = sbr.rel (0) target = $region59
              $region58: #{conv1x1.1} parent=43 // pred_region
                loop: start=0, step=1, limit=1
                $region60: #{conv1x1.1} parent=58 // loop_pre_header
                  _
                $region61: #{conv1x1.1} parent=58 // loop_header
                  %s300 = sphi 0, %s304
                  %p301 = scmp.ge.s32.totalorder %s300, 1
                  %s305 = sphi %s269, %s269
                  %s306 = sphi %s277, %s277
                $region62: #{conv1x1.1} parent=58 // loop_header_branch
                  %303 = sbr.rel (%p301) target = $region66
                $region63: #{conv1x1.1} parent=58 // loop_body
                  %v307 = vld [vmem:[%s305] sm:$0xff]
                  %308 = vst [vmem:[%s306] sm:$0xff] %v307
                  %v309 = vld [vmem:[%s305 + $0x8] sm:$0xff]
                  %310 = vst [vmem:[%s306 + $0x10] sm:$0xff] %v309
                $region64: #{conv1x1.1} parent=58 // loop_footer
                  %s304 = sadd.s32 1, %s300
                $region65: #{conv1x1.1} parent=58 // loop_footer_branch
                  %299 = sbr.rel target = $region61
                $region66: #{conv1x1.1} parent=58 // loop_exit
                  _
              $region59: #{conv1x1.1} parent=43 // pred_fallthru
                _
              // Predicated region
              $region67: #{conv1x1.1} parent=43 // pred_check
                _
              $region68: #{conv1x1.1} parent=43 // pred_check_branch
                %312 = sbr.rel target = $region70
              $region69: #{conv1x1.1} parent=43 // pred_region
                _
              $region70: #{conv1x1.1} parent=43 // pred_fallthru
                _
            $region44: #{conv1x1.1} parent=39 // pred_fallthru
              _
            // Predicated region
            $region45: #{conv1x1.1} parent=39 // pred_check
              _
            $region46: #{conv1x1.1} parent=39 // pred_check_branch
              %283 = sbr.rel target = $region48
            $region47: #{conv1x1.1} parent=39 // pred_region
              loop: start=0, step=1, limit=1
              $region49: #{conv1x1.1} parent=47 // loop_pre_header
                _
              $region50: #{conv1x1.1} parent=47 // loop_header
                %s286 = sphi 0, %s290
                %p287 = scmp.ge.s32.totalorder %s286, 1
                %s291 = sphi %s269, %s269
                %s292 = sphi %s277, %s277
              $region51: #{conv1x1.1} parent=47 // loop_header_branch
                %289 = sbr.rel (%p287) target = $region55
              $region52: #{conv1x1.1} parent=47 // loop_body
                %v293 = vld [vmem:[%s291] sm:$0xff]
                %294 = vst [vmem:[%s292] sm:$0xff] %v293
                %v295 = vld [vmem:[%s291 + $0x8] sm:$0xff]
                %296 = vst [vmem:[%s292 + $0x10] sm:$0xff] %v295
              $region53: #{conv1x1.1} parent=47 // loop_footer
                %s290 = sadd.s32 1, %s286
              $region54: #{conv1x1.1} parent=47 // loop_footer_branch
                %285 = sbr.rel target = $region50
              $region55: #{conv1x1.1} parent=47 // loop_exit
                _
            $region48: #{conv1x1.1} parent=39 // pred_fallthru
              _
          $region40: #{conv1x1.1} parent=35 // pred_fallthru
            _
          %313 = vnop
        $region36: #{conv1x1.1} parent=31 // pred_fallthru
          _
      $region32: #{conv1x1.1} parent=5 // pred_fallthru
        _
      %p314 = scmp.le.s32.totalorder 2, %s9
      // Predicated region
      $region71: #{conv1x1.1} parent=5 // pred_check
        %p315 = pneg %p314
      $region72: #{conv1x1.1} parent=5 // pred_check_branch
        %317 = sbr.rel (%p315) target = $region74
      $region73: #{conv1x1.1} parent=5 // pred_region
        %s318 = ssub.s32 %s9, 2
        // Predicated region
        $region75: #{conv1x1.1} parent=73 // pred_check
          %p319 = pneg %p122
        $region76: #{conv1x1.1} parent=73 // pred_check_branch
          %321 = sbr.rel (%p319) target = $region78
        $region77: #{conv1x1.1} parent=73 // pred_region
          %s322 = sand.u32 %s107, 1
          %s323 = sand.u32 %s107, 1
          %s324 = smul.addr %s323, 16
          %s325 = scalar_lea.vmem [#allocation2], %s324
        $region78: #{conv1x1.1} parent=73 // pred_fallthru
          _
      $region74: #{conv1x1.1} parent=5 // pred_fallthru
        _
    $region6: #{conv1x1.1} parent=1 // loop_footer
      %s13 = sadd.s32 1, %s9
    $region7: #{conv1x1.1} parent=1 // loop_footer_branch
      %8 = sbr.rel target = $region3
    $region8: #{conv1x1.1} parent=1 // loop_exit
      _

</llo_original>
